<compile_context>
chip_gen: v6e
topology: v6e:2x2x1
jax: 0.10.0
libtpu: 0.0.40
codegen_flags: <defaults>
</compile_context>

<pallas_src>
import functools
import math

import jax
import jax.numpy as jnp
from jax import lax
from jax.experimental import pallas as pl
from jax.experimental.pallas import tpu as pltpu


MM_DTYPE = jnp.bfloat16  # MXU-native operand dtype for both matmuls


def _sdpa_bias_kernel(q_ref, k_ref, v_ref, ia_t_ref, ia_f_ref, m_ref, mif_ref,
                      ctx_ref, attn_ref, *, scale):
    # Block shapes (leading (1, 1) batch/head dims indexed away):
    #   q:(bq,Dk)  k:(S,Dk)  v:(S,Dv)  ia_t/ia_f:(bq,S)  masks:(bq,S) int8
    q = q_ref[0, 0].astype(MM_DTYPE)
    k = k_ref[0, 0].astype(MM_DTYPE)

    # scores = Q @ K^T * (1/sqrt(d_k))  — contract over Dk, bf16 in / f32 acc.
    scores = lax.dot_general(
        q, k, (((1,), (1,)), ((), ())),
        preferred_element_type=jnp.float32) * scale

    # bias add (widen on the VPU), then one OR-mask fill with exactly -1e9.
    scores = scores + (ia_t_ref[0, 0].astype(jnp.float32)
                       + ia_f_ref[0, 0].astype(jnp.float32))
    masked = jnp.logical_or(m_ref[0, 0] != 0, mif_ref[0, 0] != 0)
    scores = jnp.where(masked, jnp.float32(-1.0e9), scores)

    # numerically stable softmax along the key axis
    m = jnp.max(scores, axis=-1, keepdims=True)
    e = jnp.exp(scores - m)
    denom = jnp.sum(e, axis=-1, keepdims=True)
    attn = e * pl.reciprocal(denom, approx=True)   # EUP reciprocal + VPU multiply

    attn_ref[0, 0] = attn.astype(attn_ref.dtype)
    # TODO(synk): if Dv < 128 the context writeback uses masked partial stores;
    # fold heads into the last dim in the wrapper only if profiling shows it hot.
    ctx_ref[0, 0] = jnp.dot(attn.astype(MM_DTYPE), v_ref[0, 0].astype(MM_DTYPE),
                            preferred_element_type=jnp.float32).astype(ctx_ref.dtype)


def _vmem_capacity_bytes():
    try:
        return int(pltpu.get_tpu_info().vmem_capacity_bytes)
    except Exception:
        return 64 << 20  # conservative (v7x per-core VMEM)


def _pick_block_q(S, max_block):
    """Largest q-tile <= max_block; prefers divisors of S (mult. of 32, then 8)."""
    if S <= max_block:
        return S
    for step in (32, 8):
        b = (max_block // step) * step
        while b >= step:
            if S % b == 0:
                return b
            b -= step
    # No clean divisor: use a non-dividing tile; Pallas masks the ragged edge block.
    return max(8, (max_block // 8) * 8)


def _vmem_footprint(block_q, S, Dk, Dv, qkv_b, bias_b, ctx_b, attn_b):
    f = 0
    f += 2 * block_q * Dk * qkv_b          # Q tile (double-buffered)
    f += 2 * S * Dk * qkv_b                # K (resident per (b,h))
    f += 2 * S * Dv * qkv_b                # V
    f += 2 * block_q * S * (2 * bias_b)    # ia_type + ia_feat tiles
    f += 2 * block_q * S * 2               # two int8 mask tiles
    f += 2 * block_q * Dv * ctx_b          # context out
    f += 2 * block_q * S * attn_b          # attn out
    f += 4 * block_q * S * 4               # f32 temporaries (scores / exp / attn)
    return f


@functools.partial(jax.jit, static_argnames=("scale", "block_q", "vmem_limit",
                                              "out_dtype", "attn_dtype"))
def _sdpa_call(Q, K, V, attn_mask, attn_mask_if, ia_type, ia_feat, *,
               scale, block_q, vmem_limit, out_dtype, attn_dtype):
    B, H, S, Dk = Q.shape
    Dv = V.shape[-1]

    # Masks travel as 1-byte int8 streams; widening/compare happens in-kernel.
    m8 = attn_mask.astype(jnp.int8)
    mif8 = attn_mask_if.astype(jnp.int8)

    nq = pl.cdiv(S, block_q)

    def _bcast_spec(arr, blk_shape):
        # Broadcast over B / H is encoded in the index_map (block 0), so the
        # wrapper never materializes a full [B,H,S,S] copy.
        b_b = arr.shape[0] == 1
        h_b = arr.shape[1] == 1

        def idx(b, h, i):
            return (0 if b_b else b, 0 if h_b else h, i, 0)

        return pl.BlockSpec(blk_shape, idx)

    in_specs = [
        pl.BlockSpec((1, 1, block_q, Dk), lambda b, h, i: (b, h, i, 0)),  # Q tile
        pl.BlockSpec((1, 1, S, Dk), lambda b, h, i: (b, h, 0, 0)),        # full K per (b,h)
        pl.BlockSpec((1, 1, S, Dv), lambda b, h, i: (b, h, 0, 0)),        # full V per (b,h)
        _bcast_spec(ia_type, (1, 1, block_q, S)),
        _bcast_spec(ia_feat, (1, 1, block_q, S)),
        _bcast_spec(m8, (1, 1, block_q, S)),
        _bcast_spec(mif8, (1, 1, block_q, S)),
    ]
    out_specs = [
        pl.BlockSpec((1, 1, block_q, Dv), lambda b, h, i: (b, h, i, 0)),  # context
        pl.BlockSpec((1, 1, block_q, S), lambda b, h, i: (b, h, i, 0)),   # attn
    ]

    kernel = functools.partial(_sdpa_bias_kernel, scale=scale)

    flops = 2 * B * H * S * S * (Dk + Dv)
    bytes_accessed = sum(int(a.size) * a.dtype.itemsize
                         for a in (Q, K, V, ia_type, ia_feat, m8, mif8))
    bytes_accessed += B * H * S * (Dv * jnp.dtype(out_dtype).itemsize
                                   + S * jnp.dtype(attn_dtype).itemsize)

    ctx, attn = pl.pallas_call(
        kernel,
        out_shape=(jax.ShapeDtypeStruct((B, H, S, Dv), out_dtype),
                   jax.ShapeDtypeStruct((B, H, S, S), attn_dtype)),
        grid_spec=pltpu.PrefetchScalarGridSpec(
            num_scalar_prefetch=0,
            grid=(B, H, nq),
            in_specs=in_specs,
            out_specs=out_specs,
        ),
        compiler_params=pltpu.CompilerParams(
            # Megacore split only on batch/head; the inner q-tile loop stays on
            # one core so the resident K/V blocks are not re-fetched per core.
            dimension_semantics=("parallel", "parallel", "arbitrary"),
            vmem_limit_bytes=int(vmem_limit),
        ),
        cost_estimate=pl.CostEstimate(
            flops=int(flops),
            transcendentals=B * H * S * S,
            bytes_accessed=int(bytes_accessed),
        ),
    )(Q, K, V, ia_type, ia_feat, m8, mif8)

    return ctx, attn


def sdpa_bias_forward(Q, K, V, attn_mask, attn_mask_if, ia_type, ia_feat,
                      distance_matrix=None, *, d_k=None, block_q=None,
                      out_dtype=None, attn_dtype=None):
    """Returns (context [B,H,S,Dv], attn [B,H,S,S]) matching the torch forward()."""
    del distance_matrix  # unused by the reference forward()
    B, H, S, Dk = Q.shape
    Dv = V.shape[-1]
    if d_k is None:
        d_k = Dk
    scale = 1.0 / math.sqrt(d_k)

    out_dtype = jnp.dtype(Q.dtype if out_dtype is None else out_dtype)
    attn_dtype = jnp.dtype(out_dtype if attn_dtype is None else attn_dtype)

    def _norm4(arr):
        a = jnp.asarray(arr)
        if a.ndim < 4:
            a = a.reshape((1,) * (4 - a.ndim) + a.shape)
        # Fallback materialization only for shapes that also broadcast along S.
        if (a.shape[2:] != (S, S) or a.shape[0] not in (1, B)
                or a.shape[1] not in (1, H)):
            a = jnp.broadcast_to(a, (B, H, S, S))
        return a

    ia_t = _norm4(ia_type)
    ia_f = _norm4(ia_feat)
    m = _norm4(attn_mask)
    mif = _norm4(attn_mask_if)

    vmem_cap = _vmem_capacity_bytes()
    qkv_b = jnp.dtype(Q.dtype).itemsize
    bias_b = jnp.dtype(ia_t.dtype).itemsize

    if block_q is None:
        max_block = 512 if vmem_cap >= (96 << 20) else 256
        block_q = _pick_block_q(S, max_block)
        budget = int(0.7 * vmem_cap)
        while block_q > 8 and _vmem_footprint(block_q, S, Dk, Dv, qkv_b, bias_b,
                                              out_dtype.itemsize,
                                              attn_dtype.itemsize) > budget:
            block_q = _pick_block_q(S, max(8, block_q // 2))
    block_q = int(block_q)

    fp = _vmem_footprint(block_q, S, Dk, Dv, qkv_b, bias_b,
                         out_dtype.itemsize, attn_dtype.itemsize)
    vmem_limit = int(min(0.9 * vmem_cap, max(32 << 20, int(1.5 * fp))))

    return _sdpa_call(Q, K, V, m, mif, ia_t, ia_f,
                      scale=scale, block_q=block_q, vmem_limit=vmem_limit,
                      out_dtype=out_dtype, attn_dtype=attn_dtype)


def _reference(Q, K, V, attn_mask, attn_mask_if, ia_type, ia_feat, d_k):
    scores1 = jnp.einsum("bhqd,bhkd->bhqk", Q, K) / math.sqrt(d_k)
    bias = ia_type + ia_feat
    bias = jnp.where(attn_mask_if, -1.0e9, bias)
    scores = scores1 + bias
    scores = jnp.where(attn_mask, -1.0e9, scores)
    scores = jnp.where(attn_mask_if, -1.0e9, scores)
    attn = jax.nn.softmax(scores, axis=-1)
    context = jnp.einsum("bhqk,bhkd->bhqd", attn, V)
    return context, attn


if __name__ == "__main__":
    key = jax.random.PRNGKey(0)
    kq, kk, kv, kt, kf, km1, km2 = jax.random.split(key, 7)

    B, H, S, Dk, Dv = 2, 4, 8, 32, 32
    Q = jax.random.normal(kq, (B, H, S, Dk), dtype=jnp.float32)
    K = jax.random.normal(kk, (B, H, S, Dk), dtype=jnp.float32)
    V = jax.random.normal(kv, (B, H, S, Dv), dtype=jnp.float32)
    ia_type = 0.1 * jax.random.normal(kt, (B, H, S, S), dtype=jnp.float32)
    # head-broadcast shapes exercise the index_map broadcast path (no materialization)
    ia_feat = 0.1 * jax.random.normal(kf, (B, 1, S, S), dtype=jnp.float32)
    attn_mask = jax.random.bernoulli(km1, 0.2, (B, H, S, S))
    attn_mask_if = jax.random.bernoulli(km2, 0.2, (B, 1, S, S))
    distance_matrix = jnp.zeros((B, H, S, S), dtype=jnp.float32)  # unused by forward()

    ctx, attn = sdpa_bias_forward(Q, K, V, attn_mask, attn_mask_if,
                                  ia_type, ia_feat, distance_matrix)
    ctx = jax.block_until_ready(ctx)
    attn = jax.block_until_ready(attn)

    ref_ctx, ref_attn = _reference(Q, K, V, attn_mask, attn_mask_if,
                                   ia_type, ia_feat, Dk)

    assert ctx.shape == (B, H, S, Dv) and attn.shape == (B, H, S, S)
    assert jnp.allclose(attn, ref_attn, atol=2e-2, rtol=2e-2), "attn mismatch vs reference"
    assert jnp.allclose(ctx, ref_ctx, atol=2e-2, rtol=2e-2), "context mismatch vs reference"

    print("KERNEL_OK")
</pallas_src>

<mosaic_0001>
module attributes {stable_mosaic.version = 11 : i64} {
  func.func @_sdpa_bias_kernel(%arg0: i32, %arg1: i32, %arg2: i32, %arg3: memref<1x1x8x32xf32, #tpu.memory_space<vmem>>, %arg4: memref<1x1x8x32xf32, #tpu.memory_space<vmem>>, %arg5: memref<1x1x8x32xf32, #tpu.memory_space<vmem>>, %arg6: memref<1x1x8x8xf32, #tpu.memory_space<vmem>>, %arg7: memref<1x1x8x8xf32, #tpu.memory_space<vmem>>, %arg8: memref<1x1x8x8xi8, #tpu.memory_space<vmem>>, %arg9: memref<1x1x8x8xi8, #tpu.memory_space<vmem>>, %arg10: memref<1x1x8x32xf32, #tpu.memory_space<vmem>>, %arg11: memref<1x1x8x8xf32, #tpu.memory_space<vmem>>) attributes {dimension_semantics = [#tpu.dimension_semantics<parallel>, #tpu.dimension_semantics<parallel>, #tpu.dimension_semantics<arbitrary>], iteration_bounds = array<i64: 2, 4, 1>, scalar_prefetch = 0 : i64, scratch_operands = 0 : i64, tpu.core_type = #tpu.core_type<tc>, window_params = [{transform_indices = @transform_0, window_bounds = array<i64: 1, 1, 8, 32>}, {transform_indices = @transform_1, window_bounds = array<i64: 1, 1, 8, 32>}, {transform_indices = @transform_2, window_bounds = array<i64: 1, 1, 8, 32>}, {transform_indices = @transform_3, window_bounds = array<i64: 1, 1, 8, 8>}, {transform_indices = @transform_4, window_bounds = array<i64: 1, 1, 8, 8>}, {transform_indices = @transform_5, window_bounds = array<i64: 1, 1, 8, 8>}, {transform_indices = @transform_6, window_bounds = array<i64: 1, 1, 8, 8>}, {transform_indices = @transform_7, window_bounds = array<i64: 1, 1, 8, 32>}, {transform_indices = @transform_8, window_bounds = array<i64: 1, 1, 8, 8>}]} {
    %c0 = arith.constant 0 : index
    %c0_0 = arith.constant 0 : index
    %c0_1 = arith.constant 0 : index
    %c0_2 = arith.constant 0 : index
    %0 = vector.load %arg3[%c0, %c0_0, %c0_1, %c0_2] : memref<1x1x8x32xf32, #tpu.memory_space<vmem>>, vector<1x1x8x32xf32>
    %1 = vector.shape_cast %0 : vector<1x1x8x32xf32> to vector<8x32xf32>
    %2 = arith.truncf %1 : vector<8x32xf32> to vector<8x32xbf16>
    %c0_3 = arith.constant 0 : index
    %c0_4 = arith.constant 0 : index
    %c0_5 = arith.constant 0 : index
    %c0_6 = arith.constant 0 : index
    %3 = vector.load %arg4[%c0_3, %c0_4, %c0_5, %c0_6] : memref<1x1x8x32xf32, #tpu.memory_space<vmem>>, vector<1x1x8x32xf32>
    %4 = vector.shape_cast %3 : vector<1x1x8x32xf32> to vector<8x32xf32>
    %5 = arith.truncf %4 : vector<8x32xf32> to vector<8x32xbf16>
    %cst = arith.constant dense<0.000000e+00> : vector<8x8xf32>
    %6 = tpu.matmul %2, %5, %cst {dimension_numbers = #tpu.dot_dimension_numbers<[1], [1], [0], [0], [0, 0, 1, 0], [], []>} : vector<8x32xbf16>, vector<8x32xbf16>, vector<8x8xf32> -> vector<8x8xf32>
    %cst_7 = arith.constant 0.176776692 : f32
    %7 = vector.broadcast %cst_7 : f32 to vector<8x8xf32>
    %8 = arith.mulf %6, %7 : vector<8x8xf32>
    %c0_8 = arith.constant 0 : index
    %c0_9 = arith.constant 0 : index
    %c0_10 = arith.constant 0 : index
    %c0_11 = arith.constant 0 : index
    %9 = vector.load %arg6[%c0_8, %c0_9, %c0_10, %c0_11] : memref<1x1x8x8xf32, #tpu.memory_space<vmem>>, vector<1x1x8x8xf32>
    %10 = vector.shape_cast %9 : vector<1x1x8x8xf32> to vector<8x8xf32>
    %c0_12 = arith.constant 0 : index
    %c0_13 = arith.constant 0 : index
    %c0_14 = arith.constant 0 : index
    %c0_15 = arith.constant 0 : index
    %11 = vector.load %arg7[%c0_12, %c0_13, %c0_14, %c0_15] : memref<1x1x8x8xf32, #tpu.memory_space<vmem>>, vector<1x1x8x8xf32>
    %12 = vector.shape_cast %11 : vector<1x1x8x8xf32> to vector<8x8xf32>
    %13 = arith.addf %10, %12 : vector<8x8xf32>
    %14 = arith.addf %8, %13 : vector<8x8xf32>
    %c0_16 = arith.constant 0 : index
    %c0_17 = arith.constant 0 : index
    %c0_18 = arith.constant 0 : index
    %c0_19 = arith.constant 0 : index
    %15 = vector.load %arg8[%c0_16, %c0_17, %c0_18, %c0_19] : memref<1x1x8x8xi8, #tpu.memory_space<vmem>>, vector<1x1x8x8xi8>
    %16 = vector.shape_cast %15 : vector<1x1x8x8xi8> to vector<8x8xi8>
    %c0_i8 = arith.constant 0 : i8
    %17 = vector.broadcast %c0_i8 : i8 to vector<8x8xi8>
    %18 = arith.cmpi ne, %16, %17 : vector<8x8xi8>
    %c0_20 = arith.constant 0 : index
    %c0_21 = arith.constant 0 : index
    %c0_22 = arith.constant 0 : index
    %c0_23 = arith.constant 0 : index
    %19 = vector.load %arg9[%c0_20, %c0_21, %c0_22, %c0_23] : memref<1x1x8x8xi8, #tpu.memory_space<vmem>>, vector<1x1x8x8xi8>
    %20 = vector.shape_cast %19 : vector<1x1x8x8xi8> to vector<8x8xi8>
    %c0_i8_24 = arith.constant 0 : i8
    %21 = vector.broadcast %c0_i8_24 : i8 to vector<8x8xi8>
    %22 = arith.cmpi ne, %20, %21 : vector<8x8xi8>
    %23 = arith.ori %18, %22 : vector<8x8xi1>
    %cst_25 = arith.constant -1.000000e+09 : f32
    %24 = vector.broadcast %cst_25 : f32 to vector<8x8xf32>
    %25 = arith.select %23, %24, %14 : vector<8x8xi1>, vector<8x8xf32>
    %cst_26 = arith.constant dense<0xFF800000> : vector<8xf32>
    %26 = vector.multi_reduction <maximumf>, %25, %cst_26 [1] : vector<8x8xf32> to vector<8xf32>
    %27 = vector.shape_cast %26 : vector<8xf32> to vector<8x1xf32>
    %28 = vector.broadcast %27 : vector<8x1xf32> to vector<8x8xf32>
    %29 = arith.subf %25, %28 : vector<8x8xf32>
    %30 = math.exp %29 : vector<8x8xf32>
    %cst_27 = arith.constant dense<0.000000e+00> : vector<8xf32>
    %31 = vector.multi_reduction <add>, %30, %cst_27 [1] : vector<8x8xf32> to vector<8xf32>
    %32 = vector.shape_cast %31 : vector<8xf32> to vector<8x1xf32>
    %33 = tpu.reciprocal %32 {approx = true} : vector<8x1xf32> -> vector<8x1xf32>
    %34 = vector.broadcast %33 : vector<8x1xf32> to vector<8x8xf32>
    %35 = arith.mulf %30, %34 : vector<8x8xf32>
    %c0_28 = arith.constant 0 : index
    %c0_29 = arith.constant 0 : index
    %c0_30 = arith.constant 0 : index
    %c0_31 = arith.constant 0 : index
    %36 = vector.load %arg11[%c0_28, %c0_29, %c0_30, %c0_31] : memref<1x1x8x8xf32, #tpu.memory_space<vmem>>, vector<1x1x8x8xf32>
    %37 = vector.shape_cast %36 : vector<1x1x8x8xf32> to vector<8x8xf32>
    %38 = vector.shape_cast %35 : vector<8x8xf32> to vector<1x1x8x8xf32>
    tpu.vector_store %arg11[%c0_28, %c0_29, %c0_30, %c0_31], %38 {strides = array<i32>} : memref<1x1x8x8xf32, #tpu.memory_space<vmem>>, vector<1x1x8x8xf32>,
    %39 = arith.truncf %35 : vector<8x8xf32> to vector<8x8xbf16>
    %c0_32 = arith.constant 0 : index
    %c0_33 = arith.constant 0 : index
    %c0_34 = arith.constant 0 : index
    %c0_35 = arith.constant 0 : index
    %40 = vector.load %arg5[%c0_32, %c0_33, %c0_34, %c0_35] : memref<1x1x8x32xf32, #tpu.memory_space<vmem>>, vector<1x1x8x32xf32>
    %41 = vector.shape_cast %40 : vector<1x1x8x32xf32> to vector<8x32xf32>
    %42 = arith.truncf %41 : vector<8x32xf32> to vector<8x32xbf16>
    %cst_36 = arith.constant dense<0.000000e+00> : vector<8x32xf32>
    %43 = tpu.matmul %39, %42, %cst_36 {dimension_numbers = #tpu.dot_dimension_numbers<[1], [0], [0], [1], [0, 0, 1, 1], [], []>} : vector<8x8xbf16>, vector<8x32xbf16>, vector<8x32xf32> -> vector<8x32xf32>
    %c0_37 = arith.constant 0 : index
    %c0_38 = arith.constant 0 : index
    %c0_39 = arith.constant 0 : index
    %c0_40 = arith.constant 0 : index
    %44 = vector.load %arg10[%c0_37, %c0_38, %c0_39, %c0_40] : memref<1x1x8x32xf32, #tpu.memory_space<vmem>>, vector<1x1x8x32xf32>
    %45 = vector.shape_cast %44 : vector<1x1x8x32xf32> to vector<8x32xf32>
    %46 = vector.shape_cast %43 : vector<8x32xf32> to vector<1x1x8x32xf32>
    tpu.vector_store %arg10[%c0_37, %c0_38, %c0_39, %c0_40], %46 {strides = array<i32>} : memref<1x1x8x32xf32, #tpu.memory_space<vmem>>, vector<1x1x8x32xf32>,
    return
  }
  func.func @transform_0(%arg0: i32, %arg1: i32, %arg2: i32) -> (i32, i32, i32, i32) {
    %c0_i32 = arith.constant 0 : i32
    %c0_i32_0 = arith.constant 0 : i32
    return %arg0, %arg1, %arg2, %c0_i32 : i32, i32, i32, i32
  }
  func.func @transform_1(%arg0: i32, %arg1: i32, %arg2: i32) -> (i32, i32, i32, i32) {
    %c0_i32 = arith.constant 0 : i32
    %c0_i32_0 = arith.constant 0 : i32
    %c0_i32_1 = arith.constant 0 : i32
    return %arg0, %arg1, %c0_i32, %c0_i32_0 : i32, i32, i32, i32
  }
  func.func @transform_2(%arg0: i32, %arg1: i32, %arg2: i32) -> (i32, i32, i32, i32) {
    %c0_i32 = arith.constant 0 : i32
    %c0_i32_0 = arith.constant 0 : i32
    %c0_i32_1 = arith.constant 0 : i32
    return %arg0, %arg1, %c0_i32, %c0_i32_0 : i32, i32, i32, i32
  }
  func.func @transform_3(%arg0: i32, %arg1: i32, %arg2: i32) -> (i32, i32, i32, i32) {
    %c0_i32 = arith.constant 0 : i32
    %c0_i32_0 = arith.constant 0 : i32
    return %arg0, %arg1, %arg2, %c0_i32 : i32, i32, i32, i32
  }
  func.func @transform_4(%arg0: i32, %arg1: i32, %arg2: i32) -> (i32, i32, i32, i32) {
    %c0_i32 = arith.constant 0 : i32
    %c0_i32_0 = arith.constant 0 : i32
    %c0_i32_1 = arith.constant 0 : i32
    return %arg0, %c0_i32, %arg2, %c0_i32_0 : i32, i32, i32, i32
  }
  func.func @transform_5(%arg0: i32, %arg1: i32, %arg2: i32) -> (i32, i32, i32, i32) {
    %c0_i32 = arith.constant 0 : i32
    %c0_i32_0 = arith.constant 0 : i32
    return %arg0, %arg1, %arg2, %c0_i32 : i32, i32, i32, i32
  }
  func.func @transform_6(%arg0: i32, %arg1: i32, %arg2: i32) -> (i32, i32, i32, i32) {
    %c0_i32 = arith.constant 0 : i32
    %c0_i32_0 = arith.constant 0 : i32
    %c0_i32_1 = arith.constant 0 : i32
    return %arg0, %c0_i32, %arg2, %c0_i32_0 : i32, i32, i32, i32
  }
  func.func @transform_7(%arg0: i32, %arg1: i32, %arg2: i32) -> (i32, i32, i32, i32) {
    %c0_i32 = arith.constant 0 : i32
    %c0_i32_0 = arith.constant 0 : i32
    return %arg0, %arg1, %arg2, %c0_i32 : i32, i32, i32, i32
  }
  func.func @transform_8(%arg0: i32, %arg1: i32, %arg2: i32) -> (i32, i32, i32, i32) {
    %c0_i32 = arith.constant 0 : i32
    %c0_i32_0 = arith.constant 0 : i32
    return %arg0, %arg1, %arg2, %c0_i32 : i32, i32, i32, i32
  }
}

</mosaic_0001>

<llo_original>
// kernel: _sdpa_call.1
$region0: #{_sdpa_call.1}
  #allocation0 [shape = 'u32[]', space=smem, size = 0x4, offset = 0x4, fixed_abs, tag = 'smem constant byte address 0x4 - core index']
  #allocation1 [shape = 'u32[144,128]{1,0:T(1,128)}', space=vmem, size = 0x12000, scoped, tag = 'internal scratch']
  %s0 = inlined_call_operand.hbm [shape: f32[2,4,8,32], index: 0, kind: input, shape index: {}]
  %s1 = inlined_call_operand.hbm [shape: f32[2,4,8,32], index: 1, kind: input, shape index: {}]
  %s2 = inlined_call_operand.hbm [shape: f32[2,4,8,32], index: 2, kind: input, shape index: {}]
  %s3 = inlined_call_operand.hbm [shape: f32[2,4,8,8], index: 3, kind: input, shape index: {}]
  %s4 = inlined_call_operand.vmem [shape: f32[2,1,8,8], index: 4, kind: input, shape index: {}]
  %s5 = inlined_call_operand.vmem [shape: s8[2,4,8,8], index: 5, kind: input, shape index: {}]
  %s6 = inlined_call_operand.vmem [shape: s8[2,1,8,8], index: 6, kind: input, shape index: {}]
  %s7 = inlined_call_operand.hbm [shape: f32[2,4,8,32], index: 7, kind: output, shape index: {0}]
  %s8 = inlined_call_operand.hbm [shape: f32[2,4,8,8], index: 8, kind: output, shape index: {1}]
  %9 = xla_tuple %s7, %s8
  %s10 = sld [smem:[#allocation0]]
  $region85: #{_sdpa_call.1} parent=0
    _
  %s12 = ssub.s32 1, %s10
  %s13 = scalar_select 0, %s12, %s10
  $region1: #{_sdpa_call.1} parent=0
    #allocation2 [shape = 'u8[8192]{0}', space=vmem, size = 0x2000, scoped, tag = 'input window, operand 0']
    #allocation3 [shape = 's32[2]{0}', space=sflag, size = 0x8, scoped, tag = 'scoped memory for _sdpa_call.1']
    #allocation4 [shape = 's32[2]{0}', space=sflag, size = 0x8, scoped, tag = 'scoped memory for _sdpa_call.1']
    #allocation5 [shape = 'u8[8192]{0}', space=vmem, size = 0x2000, scoped, tag = 'input window, operand 1']
    #allocation6 [shape = 's32[2]{0}', space=sflag, size = 0x8, scoped, tag = 'scoped memory for _sdpa_call.1']
    #allocation7 [shape = 'u8[8192]{0}', space=vmem, size = 0x2000, scoped, tag = 'input window, operand 2']
    #allocation8 [shape = 'u8[8192]{0}', space=vmem, size = 0x2000, scoped, tag = 'input window, operand 3']
    #allocation9 [shape = 's32[2]{0}', space=sflag, size = 0x8, scoped, tag = 'scoped memory for _sdpa_call.1']
    #allocation10 [shape = 'u8[8192]{0}', space=vmem, size = 0x2000, scoped, tag = 'output window, operand 0']
    #allocation11 [shape = 'u8[8192]{0}', space=vmem, size = 0x2000, scoped, tag = 'output window, operand 1']
    #allocation12 [shape = 's32[2]{0}', space=sflag, size = 0x8, scoped, tag = 'scoped memory for _sdpa_call.1']
    %14 = vsyncpa [#allocation3], 0
    %s15 = scalar_lea.sflag [#allocation3], 1
    %16 = vsyncpa %s15, 0
    %17 = vsyncpa [#allocation6], 0
    %s18 = scalar_lea.sflag [#allocation6], 1
    %19 = vsyncpa %s18, 0
    %20 = vsyncpa [#allocation9], 0
    %s21 = scalar_lea.sflag [#allocation9], 1
    %22 = vsyncpa %s21, 0
    %23 = vsyncpa [#allocation4], 0
    %s24 = scalar_lea.sflag [#allocation4], 1
    %25 = vsyncpa %s24, 0
    %26 = vsyncpa [#allocation12], 0
    %s27 = scalar_lea.sflag [#allocation12], 1
    %28 = vsyncpa %s27, 0
    loop: start=0, step=1, limit=10
    $region2: #{_sdpa_call.1} parent=1 // loop_pre_header
      _
    $region3: #{_sdpa_call.1} parent=1 // loop_header
      %s30 = sphi 0, %s34
      %p31 = scmp.ge.s32.totalorder %s30, 10
      %s37 = sphi 0, %s56
      %s38 = sphi 0, %s52
      %s39 = sphi 0, %s48
      %s40 = sphi 0, %s37
      %s41 = sphi 0, %s38
      %s42 = sphi 0, %s39
      %s43 = sphi 0, %s40
      %s44 = sphi 0, %s41
      %s45 = sphi 0, %s42
      %s63 = sphi 0, %s65
      %s66 = sphi 0, %s63
      %s67 = sphi 0, %s66
      %s83 = sphi 0, %s67
      %s91 = sphi 0, %s93
      %s94 = sphi 0, %s91
      %s95 = sphi 0, %s94
      %s111 = sphi 0, %s95
      %s119 = sphi 0, %s121
      %s122 = sphi 0, %s119
      %s123 = sphi 0, %s122
      %s139 = sphi 0, %s123
      %s149 = sphi 0, %s151
      %s152 = sphi 0, %s149
      %s153 = sphi 0, %s152
      %s169 = sphi 0, %s153
      %s177 = sphi 0, %s179
      %s180 = sphi 0, %s177
      %s181 = sphi 0, %s180
      %s197 = sphi 0, %s181
      %s207 = sphi 0, %s209
      %s210 = sphi 0, %s207
      %s211 = sphi 0, %s210
      %s227 = sphi 0, %s211
      %s235 = sphi 0, %s237
      %s238 = sphi 0, %s235
      %s239 = sphi 0, %s238
      %s255 = sphi 0, %s239
      %s265 = sphi 0, %s267
      %s268 = sphi 0, %s265
      %s269 = sphi 0, %s268
      %s285 = sphi 0, %s269
      %s295 = sphi 0, %s297
      %s298 = sphi 0, %s295
      %s299 = sphi 0, %s298
      %s315 = sphi 0, %s299
    $region4: #{_sdpa_call.1} parent=1 // loop_header_branch
      %33 = sbr.rel (%p31) target = $region8
    $region5: #{_sdpa_call.1} parent=1 // loop_body
      %s35 = ssub.s32 %s30, 1
      %s36 = ssub.s32 %s30, 2
      %s46 = sadd.s32 1, %s39
      %p47 = scmp.ge.s32.totalorder %s46, 1
      %s48 = scalar_select %p47, 0, %s46
      %s49 = sadd.s32 1, %s38
      %s50 = scalar_select %p47, %s49, %s38
      %p51 = scmp.ge.s32.totalorder %s50, 4
      %s52 = scalar_select %p51, 0, %s50
      %s53 = sadd.s32 1, %s37
      %s54 = scalar_select %p51, %s53, %s37
      %p55 = scmp.ge.s32.totalorder %s54, 2
      %s56 = scalar_select %p55, 0, %s54
      %s57 = ssub.s32 %s37, %s56
      %s58 = ssub.s32 %s38, %s52
      %s59 = sor.u32 %s57, %s58
      %s60 = ssub.s32 %s39, %s48
      %s61 = sor.u32 %s59, %s60
      %p62 = scmp.eq.s32.totalorder %s61, 0
      %s64 = sadd.s32 %s63, 1
      %s65 = scalar_select %p62, %s63, %s64
      %p68 = pneg %p62
      %p69 = scmp.eq.s32.totalorder %s30, 7
      %p70 = por %p68, %p69
      %p71 = scmp.ne.s32.totalorder %s63, %s66
      %p72 = scmp.eq.s32.totalorder %s30, 0
      %p73 = por %p71, %p72
      %p74 = scmp.ne.s32.totalorder %s63, %s66
      %p75 = scmp.eq.s32.totalorder %s35, 7
      %p76 = por %p74, %p75
      %p77 = scmp.ne.s32.totalorder %s66, %s67
      %p78 = scmp.eq.s32.totalorder %s35, 0
      %p79 = por %p77, %p78
      %p80 = scmp.ne.s32.totalorder %s66, %s67
      %p81 = scmp.eq.s32.totalorder %s36, 7
      %p82 = por %p80, %p81
      %p84 = scmp.ne.s32.totalorder %s67, %s83
      %p85 = scmp.eq.s32.totalorder %s36, 0
      %p86 = por %p84, %p85
      %s87 = ssub.s32 %s37, %s56
      %s88 = ssub.s32 %s38, %s52
      %s89 = sor.u32 %s87, %s88
      %p90 = scmp.eq.s32.totalorder %s89, 0
      %s92 = sadd.s32 %s91, 1
      %s93 = scalar_select %p90, %s91, %s92
      %p96 = pneg %p90
      %p97 = scmp.eq.s32.totalorder %s30, 7
      %p98 = por %p96, %p97
      %p99 = scmp.ne.s32.totalorder %s91, %s94
      %p100 = scmp.eq.s32.totalorder %s30, 0
      %p101 = por %p99, %p100
      %p102 = scmp.ne.s32.totalorder %s91, %s94
      %p103 = scmp.eq.s32.totalorder %s35, 7
      %p104 = por %p102, %p103
      %p105 = scmp.ne.s32.totalorder %s94, %s95
      %p106 = scmp.eq.s32.totalorder %s35, 0
      %p107 = por %p105, %p106
      %p108 = scmp.ne.s32.totalorder %s94, %s95
      %p109 = scmp.eq.s32.totalorder %s36, 7
      %p110 = por %p108, %p109
      %p112 = scmp.ne.s32.totalorder %s95, %s111
      %p113 = scmp.eq.s32.totalorder %s36, 0
      %p114 = por %p112, %p113
      %s115 = ssub.s32 %s37, %s56
      %s116 = ssub.s32 %s38, %s52
      %s117 = sor.u32 %s115, %s116
      %p118 = scmp.eq.s32.totalorder %s117, 0
      %s120 = sadd.s32 %s119, 1
      %s121 = scalar_select %p118, %s119, %s120
      %p124 = pneg %p118
      %p125 = scmp.eq.s32.totalorder %s30, 7
      %p126 = por %p124, %p125
      %p127 = scmp.ne.s32.totalorder %s119, %s122
      %p128 = scmp.eq.s32.totalorder %s30, 0
      %p129 = por %p127, %p128
      %p130 = scmp.ne.s32.totalorder %s119, %s122
      %p131 = scmp.eq.s32.totalorder %s35, 7
      %p132 = por %p130, %p131
      %p133 = scmp.ne.s32.totalorder %s122, %s123
      %p134 = scmp.eq.s32.totalorder %s35, 0
      %p135 = por %p133, %p134
      %p136 = scmp.ne.s32.totalorder %s122, %s123
      %p137 = scmp.eq.s32.totalorder %s36, 7
      %p138 = por %p136, %p137
      %p140 = scmp.ne.s32.totalorder %s123, %s139
      %p141 = scmp.eq.s32.totalorder %s36, 0
      %p142 = por %p140, %p141
      %s143 = ssub.s32 %s37, %s56
      %s144 = ssub.s32 %s38, %s52
      %s145 = sor.u32 %s143, %s144
      %s146 = ssub.s32 %s39, %s48
      %s147 = sor.u32 %s145, %s146
      %p148 = scmp.eq.s32.totalorder %s147, 0
      %s150 = sadd.s32 %s149, 1
      %s151 = scalar_select %p148, %s149, %s150
      %p154 = pneg %p148
      %p155 = scmp.eq.s32.totalorder %s30, 7
      %p156 = por %p154, %p155
      %p157 = scmp.ne.s32.totalorder %s149, %s152
      %p158 = scmp.eq.s32.totalorder %s30, 0
      %p159 = por %p157, %p158
      %p160 = scmp.ne.s32.totalorder %s149, %s152
      %p161 = scmp.eq.s32.totalorder %s35, 7
      %p162 = por %p160, %p161
      %p163 = scmp.ne.s32.totalorder %s152, %s153
      %p164 = scmp.eq.s32.totalorder %s35, 0
      %p165 = por %p163, %p164
      %p166 = scmp.ne.s32.totalorder %s152, %s153
      %p167 = scmp.eq.s32.totalorder %s36, 7
      %p168 = por %p166, %p167
      %p170 = scmp.ne.s32.totalorder %s153, %s169
      %p171 = scmp.eq.s32.totalorder %s36, 0
      %p172 = por %p170, %p171
      %s173 = ssub.s32 %s37, %s56
      %s174 = ssub.s32 %s39, %s48
      %s175 = sor.u32 %s173, %s174
      %p176 = scmp.eq.s32.totalorder %s175, 0
      %s178 = sadd.s32 %s177, 1
      %s179 = scalar_select %p176, %s177, %s178
      %p182 = pneg %p176
      %p183 = scmp.eq.s32.totalorder %s30, 7
      %p184 = por %p182, %p183
      %p185 = scmp.ne.s32.totalorder %s177, %s180
      %p186 = scmp.eq.s32.totalorder %s30, 0
      %p187 = por %p185, %p186
      %p188 = scmp.ne.s32.totalorder %s177, %s180
      %p189 = scmp.eq.s32.totalorder %s35, 7
      %p190 = por %p188, %p189
      %p191 = scmp.ne.s32.totalorder %s180, %s181
      %p192 = scmp.eq.s32.totalorder %s35, 0
      %p193 = por %p191, %p192
      %p194 = scmp.ne.s32.totalorder %s180, %s181
      %p195 = scmp.eq.s32.totalorder %s36, 7
      %p196 = por %p194, %p195
      %p198 = scmp.ne.s32.totalorder %s181, %s197
      %p199 = scmp.eq.s32.totalorder %s36, 0
      %p200 = por %p198, %p199
      %s201 = ssub.s32 %s37, %s56
      %s202 = ssub.s32 %s38, %s52
      %s203 = sor.u32 %s201, %s202
      %s204 = ssub.s32 %s39, %s48
      %s205 = sor.u32 %s203, %s204
      %p206 = scmp.eq.s32.totalorder %s205, 0
      %s208 = sadd.s32 %s207, 1
      %s209 = scalar_select %p206, %s207, %s208
      %p212 = pneg %p206
      %p213 = scmp.eq.s32.totalorder %s30, 7
      %p214 = por %p212, %p213
      %p215 = scmp.ne.s32.totalorder %s207, %s210
      %p216 = scmp.eq.s32.totalorder %s30, 0
      %p217 = por %p215, %p216
      %p218 = scmp.ne.s32.totalorder %s207, %s210
      %p219 = scmp.eq.s32.totalorder %s35, 7
      %p220 = por %p218, %p219
      %p221 = scmp.ne.s32.totalorder %s210, %s211
      %p222 = scmp.eq.s32.totalorder %s35, 0
      %p223 = por %p221, %p222
      %p224 = scmp.ne.s32.totalorder %s210, %s211
      %p225 = scmp.eq.s32.totalorder %s36, 7
      %p226 = por %p224, %p225
      %p228 = scmp.ne.s32.totalorder %s211, %s227
      %p229 = scmp.eq.s32.totalorder %s36, 0
      %p230 = por %p228, %p229
      %s231 = ssub.s32 %s37, %s56
      %s232 = ssub.s32 %s39, %s48
      %s233 = sor.u32 %s231, %s232
      %p234 = scmp.eq.s32.totalorder %s233, 0
      %s236 = sadd.s32 %s235, 1
      %s237 = scalar_select %p234, %s235, %s236
      %p240 = pneg %p234
      %p241 = scmp.eq.s32.totalorder %s30, 7
      %p242 = por %p240, %p241
      %p243 = scmp.ne.s32.totalorder %s235, %s238
      %p244 = scmp.eq.s32.totalorder %s30, 0
      %p245 = por %p243, %p244
      %p246 = scmp.ne.s32.totalorder %s235, %s238
      %p247 = scmp.eq.s32.totalorder %s35, 7
      %p248 = por %p246, %p247
      %p249 = scmp.ne.s32.totalorder %s238, %s239
      %p250 = scmp.eq.s32.totalorder %s35, 0
      %p251 = por %p249, %p250
      %p252 = scmp.ne.s32.totalorder %s238, %s239
      %p253 = scmp.eq.s32.totalorder %s36, 7
      %p254 = por %p252, %p253
      %p256 = scmp.ne.s32.totalorder %s239, %s255
      %p257 = scmp.eq.s32.totalorder %s36, 0
      %p258 = por %p256, %p257
      %s259 = ssub.s32 %s37, %s56
      %s260 = ssub.s32 %s38, %s52
      %s261 = sor.u32 %s259, %s260
      %s262 = ssub.s32 %s39, %s48
      %s263 = sor.u32 %s261, %s262
      %p264 = scmp.eq.s32.totalorder %s263, 0
      %s266 = sadd.s32 %s265, 1
      %s267 = scalar_select %p264, %s265, %s266
      %p270 = pneg %p264
      %p271 = scmp.eq.s32.totalorder %s30, 7
      %p272 = por %p270, %p271
      %p273 = scmp.ne.s32.totalorder %s265, %s268
      %p274 = scmp.eq.s32.totalorder %s30, 0
      %p275 = por %p273, %p274
      %p276 = scmp.ne.s32.totalorder %s265, %s268
      %p277 = scmp.eq.s32.totalorder %s35, 7
      %p278 = por %p276, %p277
      %p279 = scmp.ne.s32.totalorder %s268, %s269
      %p280 = scmp.eq.s32.totalorder %s35, 0
      %p281 = por %p279, %p280
      %p282 = scmp.ne.s32.totalorder %s268, %s269
      %p283 = scmp.eq.s32.totalorder %s36, 7
      %p284 = por %p282, %p283
      %p286 = scmp.ne.s32.totalorder %s269, %s285
      %p287 = scmp.eq.s32.totalorder %s36, 0
      %p288 = por %p286, %p287
      %s289 = ssub.s32 %s37, %s56
      %s290 = ssub.s32 %s38, %s52
      %s291 = sor.u32 %s289, %s290
      %s292 = ssub.s32 %s39, %s48
      %s293 = sor.u32 %s291, %s292
      %p294 = scmp.eq.s32.totalorder %s293, 0
      %s296 = sadd.s32 %s295, 1
      %s297 = scalar_select %p294, %s295, %s296
      %p300 = pneg %p294
      %p301 = scmp.eq.s32.totalorder %s30, 7
      %p302 = por %p300, %p301
      %p303 = scmp.ne.s32.totalorder %s295, %s298
      %p304 = scmp.eq.s32.totalorder %s30, 0
      %p305 = por %p303, %p304
      %p306 = scmp.ne.s32.totalorder %s295, %s298
      %p307 = scmp.eq.s32.totalorder %s35, 7
      %p308 = por %p306, %p307
      %p309 = scmp.ne.s32.totalorder %s298, %s299
      %p310 = scmp.eq.s32.totalorder %s35, 0
      %p311 = por %p309, %p310
      %p312 = scmp.ne.s32.totalorder %s298, %s299
      %p313 = scmp.eq.s32.totalorder %s36, 7
      %p314 = por %p312, %p313
      %p316 = scmp.ne.s32.totalorder %s299, %s315
      %p317 = scmp.eq.s32.totalorder %s36, 0
      %p318 = por %p316, %p317
      %p319 = scmp.le.s32.totalorder 1, %s30
      %p320 = scmp.lt.s32.totalorder %s30, 9
      %p321 = pnand %p319, %p320
      %p322 = pneg %p321
      // Predicated region
      $region9: #{_sdpa_call.1} parent=5 // pred_check
        _
      $region10: #{_sdpa_call.1} parent=5 // pred_check_branch
        %324 = sbr.rel (%p321) target = $region12
      $region11: #{_sdpa_call.1} parent=5 // pred_region
        %s325 = ssub.s32 %s30, 1
      $region12: #{_sdpa_call.1} parent=5 // pred_fallthru
        _
      %p326 = scmp.lt.s32.totalorder %s30, 8
      // Predicated region
      $region13: #{_sdpa_call.1} parent=5 // pred_check
        %p327 = pneg %p326
      $region14: #{_sdpa_call.1} parent=5 // pred_check_branch
        %329 = sbr.rel (%p327) target = $region16
      $region15: #{_sdpa_call.1} parent=5 // pred_region
        // Predicated region
        $region17: #{_sdpa_call.1} parent=15 // pred_check
          %p330 = pneg %p73
        $region18: #{_sdpa_call.1} parent=15 // pred_check_branch
          %332 = sbr.rel (%p330) target = $region20
        $region19: #{_sdpa_call.1} parent=15 // pred_region
          %s333 = sand.u32 %s63, 1
          %s334 = scalar_lea.sflag [#allocation3], %s333
          %s335 = sand.u32 %s63, 1
          %s336 = smul.addr %s335, 8
          %s337 = scalar_lea.vmem [#allocation2], %s336
          %s339 = ssub.s32 128, 128
          %340 = vsyncadd %s334, %s339
          %s341 = sadd.s32 %s39, %s38
          %s342 = smul.addr %s37, 4
          %s343 = sadd.s32 %s341, %s342
          %s344 = smul.addr %s343, 128
          %s345 = scalar_lea.hbm %s0, %s344
          %s347 = sshll.u32 %s337, 4
          %s348 = int_to_ptr.vmem [resolvable:$true] %s347
          %350 = dma.hbm_to_vmem [thread:$0]  %s345, 128, %s348, %s334
        $region20: #{_sdpa_call.1} parent=15 // pred_fallthru
          _
        // Predicated region
        $region21: #{_sdpa_call.1} parent=15 // pred_check
          %p351 = pneg %p101
        $region22: #{_sdpa_call.1} parent=15 // pred_check_branch
          %353 = sbr.rel (%p351) target = $region24
        $region23: #{_sdpa_call.1} parent=15 // pred_region
          %s354 = sand.u32 %s30, 1
          %s355 = scalar_lea.sflag [#allocation6], %s354
          %s356 = sand.u32 %s91, 1
          %s357 = smul.addr %s356, 8
          %s358 = scalar_lea.vmem [#allocation5], %s357
          %s360 = ssub.s32 128, 128
          %361 = vsyncadd %s355, %s360
          %s362 = smul.addr %s37, 4
          %s363 = sadd.s32 %s38, %s362
          %s364 = smul.addr %s363, 128
          %s365 = scalar_lea.hbm %s1, %s364
          %s367 = sshll.u32 %s358, 4
          %s368 = int_to_ptr.vmem [resolvable:$true] %s367
          %370 = dma.hbm_to_vmem [thread:$0]  %s365, 128, %s368, %s355
        $region24: #{_sdpa_call.1} parent=15 // pred_fallthru
          _
        // Predicated region
        $region25: #{_sdpa_call.1} parent=15 // pred_check
          %p371 = pneg %p129
        $region26: #{_sdpa_call.1} parent=15 // pred_check_branch
          %373 = sbr.rel (%p371) target = $region28
        $region27: #{_sdpa_call.1} parent=15 // pred_region
          %s374 = sand.u32 %s30, 1
          %s375 = scalar_lea.sflag [#allocation6], %s374
          %s376 = sand.u32 %s119, 1
          %s377 = smul.addr %s376, 8
          %s378 = scalar_lea.vmem [#allocation7], %s377
          %s380 = ssub.s32 128, 128
          %381 = vsyncadd %s375, %s380
          %s382 = smul.addr %s37, 4
          %s383 = sadd.s32 %s38, %s382
          %s384 = smul.addr %s383, 128
          %s385 = scalar_lea.hbm %s2, %s384
          %s387 = sshll.u32 %s378, 4
          %s388 = int_to_ptr.vmem [resolvable:$true] %s387
          %390 = dma.hbm_to_vmem [thread:$0]  %s385, 128, %s388, %s375
        $region28: #{_sdpa_call.1} parent=15 // pred_fallthru
          _
        // Predicated region
        $region29: #{_sdpa_call.1} parent=15 // pred_check
          %p391 = pneg %p159
        $region30: #{_sdpa_call.1} parent=15 // pred_check_branch
          %393 = sbr.rel (%p391) target = $region32
        $region31: #{_sdpa_call.1} parent=15 // pred_region
          %s394 = sand.u32 %s149, 1
          %s395 = scalar_lea.sflag [#allocation9], %s394
          %s396 = sand.u32 %s149, 1
          %s397 = smul.addr %s396, 8
          %s398 = scalar_lea.vmem [#allocation8], %s397
          %s400 = ssub.s32 128, 128
          %401 = vsyncadd %s395, %s400
          %s402 = sadd.s32 %s39, %s38
          %s403 = smul.addr %s37, 4
          %s404 = sadd.s32 %s402, %s403
          %s405 = smul.addr %s404, 128
          %s406 = scalar_lea.hbm %s3, %s405
          %s408 = sshll.u32 %s398, 4
          %s409 = int_to_ptr.vmem [resolvable:$true] %s408
          %411 = dma.hbm_to_vmem [thread:$0]  %s406, 128, %s409, %s395
        $region32: #{_sdpa_call.1} parent=15 // pred_fallthru
          _
        // Predicated region
        $region33: #{_sdpa_call.1} parent=15 // pred_check
          %p412 = pneg %p187
        $region34: #{_sdpa_call.1} parent=15 // pred_check_branch
          %414 = sbr.rel (%p412) target = $region36
        $region35: #{_sdpa_call.1} parent=15 // pred_region
          %p415 = scmp.lt.s32.totalorder %s37, 1
          %s416 = scalar_select %p415, %s37, 1
          %p417 = scmp.lt.s32.totalorder %s39, 0
          %s418 = scalar_select %p417, %s39, 0
          %s419 = sadd.s32 %s418, %s416
          %s420 = smul.addr %s419, 8
          %s421 = scalar_lea.vmem %s4, %s420
        $region36: #{_sdpa_call.1} parent=15 // pred_fallthru
          _
        // Predicated region
        $region37: #{_sdpa_call.1} parent=15 // pred_check
          %p422 = pneg %p217
        $region38: #{_sdpa_call.1} parent=15 // pred_check_branch
          %424 = sbr.rel (%p422) target = $region40
        $region39: #{_sdpa_call.1} parent=15 // pred_region
          %p425 = scmp.lt.s32.totalorder %s37, 1
          %s426 = scalar_select %p425, %s37, 1
          %p427 = scmp.lt.s32.totalorder %s38, 3
          %s428 = scalar_select %p427, %s38, 3
          %p429 = scmp.lt.s32.totalorder %s39, 0
          %s430 = scalar_select %p429, %s39, 0
          %s431 = sadd.s32 %s430, %s428
          %s432 = smul.addr %s426, 4
          %s433 = sadd.s32 %s431, %s432
          %s434 = smul.addr %s433, 2
          %s435 = scalar_lea.vmem %s5, %s434
        $region40: #{_sdpa_call.1} parent=15 // pred_fallthru
          _
        // Predicated region
        $region41: #{_sdpa_call.1} parent=15 // pred_check
          %p436 = pneg %p245
        $region42: #{_sdpa_call.1} parent=15 // pred_check_branch
          %438 = sbr.rel (%p436) target = $region44
        $region43: #{_sdpa_call.1} parent=15 // pred_region
          %p439 = scmp.lt.s32.totalorder %s37, 1
          %s440 = scalar_select %p439, %s37, 1
          %p441 = scmp.lt.s32.totalorder %s39, 0
          %s442 = scalar_select %p441, %s39, 0
          %s443 = sadd.s32 %s442, %s440
          %s444 = smul.addr %s443, 2
          %s445 = scalar_lea.vmem %s6, %s444
        $region44: #{_sdpa_call.1} parent=15 // pred_fallthru
          _
      $region16: #{_sdpa_call.1} parent=5 // pred_fallthru
        _
      %p446 = scmp.le.s32.totalorder 1, %s30
      %p447 = scmp.lt.s32.totalorder %s30, 9
      %p448 = pnand %p446, %p447
      %p449 = pneg %p448
      // Predicated region
      $region45: #{_sdpa_call.1} parent=5 // pred_check
        _
      $region46: #{_sdpa_call.1} parent=5 // pred_check_branch
        %451 = sbr.rel (%p448) target = $region48
      $region47: #{_sdpa_call.1} parent=5 // pred_region
        %s452 = ssub.s32 %s30, 1
        %s453 = sand.u32 %s66, 1
        %s454 = scalar_lea.sflag [#allocation3], %s453
        %s455 = sand.u32 %s66, 1
        %s456 = smul.addr %s455, 8
        %s457 = scalar_lea.vmem [#allocation2], %s456
        // Predicated region
        $region49: #{_sdpa_call.1} parent=47 // pred_check
          %p458 = pneg %p79
        $region50: #{_sdpa_call.1} parent=47 // pred_check_branch
          %460 = sbr.rel (%p458) target = $region52
        $region51: #{_sdpa_call.1} parent=47 // pred_region
          %461 = dma.done %s454, 128
        $region52: #{_sdpa_call.1} parent=47 // pred_fallthru
          _
        %s462 = sand.u32 %s35, 1
        %s463 = scalar_lea.sflag [#allocation6], %s462
        %s464 = sand.u32 %s94, 1
        %s465 = smul.addr %s464, 8
        %s466 = scalar_lea.vmem [#allocation5], %s465
        // Predicated region
        $region53: #{_sdpa_call.1} parent=47 // pred_check
          %p467 = pneg %p107
        $region54: #{_sdpa_call.1} parent=47 // pred_check_branch
          %469 = sbr.rel (%p467) target = $region56
        $region55: #{_sdpa_call.1} parent=47 // pred_region
          %470 = dma.done %s463, 128
        $region56: #{_sdpa_call.1} parent=47 // pred_fallthru
          _
        %s471 = sand.u32 %s35, 1
        %s472 = scalar_lea.sflag [#allocation6], %s471
        %s473 = sand.u32 %s122, 1
        %s474 = smul.addr %s473, 8
        %s475 = scalar_lea.vmem [#allocation7], %s474
        // Predicated region
        $region57: #{_sdpa_call.1} parent=47 // pred_check
          %p476 = pneg %p135
        $region58: #{_sdpa_call.1} parent=47 // pred_check_branch
          %478 = sbr.rel (%p476) target = $region60
        $region59: #{_sdpa_call.1} parent=47 // pred_region
          %479 = dma.done %s472, 128
        $region60: #{_sdpa_call.1} parent=47 // pred_fallthru
          _
        %s480 = sand.u32 %s152, 1
        %s481 = scalar_lea.sflag [#allocation9], %s480
        %s482 = sand.u32 %s152, 1
        %s483 = smul.addr %s482, 8
        %s484 = scalar_lea.vmem [#allocation8], %s483
        // Predicated region
        $region61: #{_sdpa_call.1} parent=47 // pred_check
          %p485 = pneg %p165
        $region62: #{_sdpa_call.1} parent=47 // pred_check_branch
          %487 = sbr.rel (%p485) target = $region64
        $region63: #{_sdpa_call.1} parent=47 // pred_region
          %488 = dma.done %s481, 128
        $region64: #{_sdpa_call.1} parent=47 // pred_fallthru
          _
        %s489 = sand.u32 %s66, 1
        %s490 = scalar_lea.sflag [#allocation3], %s489
        %s491 = sand.u32 %s66, 1
        %s492 = smul.addr %s491, 8
        %s493 = scalar_lea.vmem [#allocation2], %s492
        %p494 = pneg %p79
        %p495 = pneg %p76
        %s496 = sand.u32 %s35, 1
        %s497 = scalar_lea.sflag [#allocation6], %s496
        %s498 = sand.u32 %s94, 1
        %s499 = smul.addr %s498, 8
        %s500 = scalar_lea.vmem [#allocation5], %s499
        %p501 = pneg %p107
        %p502 = pneg %p104
        %s503 = sand.u32 %s35, 1
        %s504 = scalar_lea.sflag [#allocation6], %s503
        %s505 = sand.u32 %s122, 1
        %s506 = smul.addr %s505, 8
        %s507 = scalar_lea.vmem [#allocation7], %s506
        %p508 = pneg %p135
        %p509 = pneg %p132
        %s510 = sand.u32 %s152, 1
        %s511 = scalar_lea.sflag [#allocation9], %s510
        %s512 = sand.u32 %s152, 1
        %s513 = smul.addr %s512, 8
        %s514 = scalar_lea.vmem [#allocation8], %s513
        %p515 = pneg %p165
        %p516 = pneg %p162
        %p517 = scmp.lt.s32.totalorder %s40, 1
        %s518 = scalar_select %p517, %s40, 1
        %p519 = scmp.lt.s32.totalorder %s42, 0
        %s520 = scalar_select %p519, %s42, 0
        %s521 = sadd.s32 %s520, %s518
        %s522 = smul.addr %s521, 8
        %s523 = scalar_lea.vmem %s4, %s522
        %p524 = pneg %p193
        %p525 = pneg %p190
        %p526 = scmp.lt.s32.totalorder %s40, 1
        %s527 = scalar_select %p526, %s40, 1
        %p528 = scmp.lt.s32.totalorder %s41, 3
        %s529 = scalar_select %p528, %s41, 3
        %p530 = scmp.lt.s32.totalorder %s42, 0
        %s531 = scalar_select %p530, %s42, 0
        %s532 = sadd.s32 %s531, %s529
        %s533 = smul.addr %s527, 4
        %s534 = sadd.s32 %s532, %s533
        %s535 = smul.addr %s534, 2
        %s536 = scalar_lea.vmem %s5, %s535
        %p537 = pneg %p223
        %p538 = pneg %p220
        %p539 = scmp.lt.s32.totalorder %s40, 1
        %s540 = scalar_select %p539, %s40, 1
        %p541 = scmp.lt.s32.totalorder %s42, 0
        %s542 = scalar_select %p541, %s42, 0
        %s543 = sadd.s32 %s542, %s540
        %s544 = smul.addr %s543, 2
        %s545 = scalar_lea.vmem %s6, %s544
        %p546 = pneg %p251
        %p547 = pneg %p248
        %p548 = pneg %p281
        %p549 = pneg %p278
        %s550 = sand.u32 %s268, 1
        %s551 = scalar_lea.sflag [#allocation4], %s550
        %s552 = sand.u32 %s268, 1
        %s553 = smul.addr %s552, 8
        %s554 = scalar_lea.vmem [#allocation10], %s553
        %p555 = pneg %p311
        %p556 = pneg %p308
        %s557 = sand.u32 %s298, 1
        %s558 = scalar_lea.sflag [#allocation12], %s557
        %s559 = sand.u32 %s298, 1
        %s560 = smul.addr %s559, 8
        %s561 = scalar_lea.vmem [#allocation11], %s560
        %p562 = scmp.lt.s32.totalorder %s40, 1
        %s563 = scalar_select %p562, %s40, 1
        %p564 = scmp.lt.s32.totalorder %s42, 0
        %s565 = scalar_select %p564, %s42, 0
        %s566 = sadd.s32 %s565, %s563
        %s567 = smul.addr %s566, 8
        %s568 = scalar_lea.vmem %s4, %s567
        %p569 = scmp.lt.s32.totalorder %s40, 1
        %s570 = scalar_select %p569, %s40, 1
        %p571 = scmp.lt.s32.totalorder %s41, 3
        %s572 = scalar_select %p571, %s41, 3
        %p573 = scmp.lt.s32.totalorder %s42, 0
        %s574 = scalar_select %p573, %s42, 0
        %s575 = sadd.s32 %s574, %s572
        %s576 = smul.addr %s570, 4
        %s577 = sadd.s32 %s575, %s576
        %s578 = smul.addr %s577, 2
        %s579 = scalar_lea.vmem %s5, %s578
        %p580 = scmp.lt.s32.totalorder %s40, 1
        %s581 = scalar_select %p580, %s40, 1
        %p582 = scmp.lt.s32.totalorder %s42, 0
        %s583 = scalar_select %p582, %s42, 0
        %s584 = sadd.s32 %s583, %s581
        %s585 = smul.addr %s584, 2
        %s586 = scalar_lea.vmem %s6, %s585
        %v590 = vld [vmem:[%s457] sm:$0xff]
        %v591 = vpack.c.bf16 %v590, %v590
        %v592 = vld [vmem:[%s466] sm:$0xff]
        %v593 = vpack.c.bf16 %v592, %v592
        %vm594 = vcmask 261120
        %v596 = vsel %vm594, %v591, 0
        %v599 = vsel %vm594, %v593, 0
        %601 = vmatprep.subr.bf16.mxu0 0
        %602 = vmatpush1.bf16.xpose.msra.mxu0 0
        %603 = vmatprep.subr.bf16.mxu0 0
        %604 = vmatpush1.bf16.xpose.msra.mxu0 0
        %605 = vmatprep.subr.bf16.mxu0 0
        %606 = vmatpush1.bf16.xpose.msra.mxu0 0
        %607 = vmatprep.subr.bf16.mxu0 0
        %608 = vmatpush1.bf16.xpose.msra.mxu0 0
        %609 = vmatprep.subr.bf16.mxu0 0
        %610 = vmatpush1.bf16.xpose.msra.mxu0 0
        %611 = vmatprep.subr.bf16.mxu0 0
        %612 = vmatpush1.bf16.xpose.msra.mxu0 0
        %613 = vmatprep.subr.bf16.mxu0 0
        %614 = vmatpush1.bf16.xpose.msra.mxu0 0
        %615 = vmatprep.subr.bf16.mxu0 0
        %616 = vmatpush1.bf16.xpose.msra.mxu0 %v599
        %617 = vmatprep.subr.bf16.mxu0 0
        %618 = vmatpush2.bf16.xpose.msra.mxu0 0
        %619 = vmatprep.subr.bf16.mxu0 0
        %620 = vmatpush2.bf16.xpose.msra.mxu0 0
        %621 = vmatprep.subr.bf16.mxu0 0
        %622 = vmatpush2.bf16.xpose.msra.mxu0 0
        %623 = vmatprep.subr.bf16.mxu0 0
        %624 = vmatpush2.bf16.xpose.msra.mxu0 0
        %625 = vmatprep.subr.bf16.mxu0 0
        %626 = vmatpush2.bf16.xpose.msra.mxu0 0
        %627 = vmatprep.subr.bf16.mxu0 0
        %628 = vmatpush2.bf16.xpose.msra.mxu0 0
        %629 = vmatprep.subr.bf16.mxu0 0
        %630 = vmatpush2.bf16.xpose.msra.mxu0 0
        %631 = vmatprep.subr.bf16.mxu0 0
        %632 = vmatpush2.bf16.xpose.msra.mxu0 0
        %633 = vmatprep.mubr.bf16.mxu0 0
        %634 = vmatmul.mubr.bf16.gmra.mxu0 %v596
        %v635 = vpop.f32.mrf.mxu0
        %v636 = vadd.f32 0.0, %v635
        %v637 = vpop.f32.mrf.mxu0
        %v638 = vpop.f32.mrf.mxu0
        %v639 = vpop.f32.mrf.mxu0
        %640 = vdwg.mxu0
        %v641 = vmul.f32 %v636, 0.17677669
        %v642 = vld [vmem:[%s484] sm:$0xff]
        %v643 = vld [vmem:[%s568] sm:$0xff]
        %v644 = vadd.f32 %v642, %v643
        %v645 = vadd.f32 %v641, %v644
        %v646 = vld [vmem:[%s579] sm:$0x3]
        %vm647 = vnez %v646
        %v648 = vld [vmem:[%s586] sm:$0x3]
        %vm649 = vnez %v648
        %vm650 = vmor %vm647, %vm649
        %v651 = vsel %vm650, 16843009, 0
        %v652 = vunpack.c.0.s8 %v651
        %vm653 = vcmp.ne.s32.totalorder %v652, 0
        %v654 = vsel %vm653, -1e+09, %v645
        %vm655 = vcmask 64512
        %v656 = vsel %vm655, %v654, -inf
        %657 = vmax.xlane.f32.xlu0 %v656
        %v658 = vpop.xlane.xlu0 %657
        %v659 = vsub.f32 %v654, %v658
        %v660 = vmul.f32 %v659, 1.442695
        %v661 = vpow.pop %v660
        %v662 = vsel %vm655, %v661, 0.0
        %663 = vadd.xlane.f32.xlu0 %v662
        %v664 = vpop.xlane.xlu0 %663
        %v665 = vrcp.pop %v664
        %v666 = vmul.f32 %v661, %v665
        %667 = vst.msk [vmem:[%s561] sm:$0xff] %vm655, %v666
        %v668 = vpack.c.bf16 %v666, %v666
        %v669 = vld [vmem:[%s475] sm:$0xff]
        %v670 = vpack.c.bf16 %v669, %v669
        %v672 = vsel %vm655, %v668, 0
        %vm674 = vcmask 1043456
        %v676 = vsel %vm674, %v670, 0
        %678 = vmatprep.subr.bf16.mxu0 0
        %679 = vmatpush1.bf16.msra.mxu0 0
        %680 = vmatprep.subr.bf16.mxu0 0
        %681 = vmatpush1.bf16.msra.mxu0 0
        %682 = vmatprep.subr.bf16.mxu0 0
        %683 = vmatpush1.bf16.msra.mxu0 0
        %684 = vmatprep.subr.bf16.mxu0 0
        %685 = vmatpush1.bf16.msra.mxu0 0
        %686 = vmatprep.subr.bf16.mxu0 0
        %687 = vmatpush1.bf16.msra.mxu0 0
        %688 = vmatprep.subr.bf16.mxu0 0
        %689 = vmatpush1.bf16.msra.mxu0 0
        %690 = vmatprep.subr.bf16.mxu0 0
        %691 = vmatpush1.bf16.msra.mxu0 0
        %692 = vmatprep.subr.bf16.mxu0 0
        %693 = vmatpush1.bf16.msra.mxu0 %v676
        %694 = vmatprep.subr.bf16.mxu0 0
        %695 = vmatpush2.bf16.msra.mxu0 0
        %696 = vmatprep.subr.bf16.mxu0 0
        %697 = vmatpush2.bf16.msra.mxu0 0
        %698 = vmatprep.subr.bf16.mxu0 0
        %699 = vmatpush2.bf16.msra.mxu0 0
        %700 = vmatprep.subr.bf16.mxu0 0
        %701 = vmatpush2.bf16.msra.mxu0 0
        %702 = vmatprep.subr.bf16.mxu0 0
        %703 = vmatpush2.bf16.msra.mxu0 0
        %704 = vmatprep.subr.bf16.mxu0 0
        %705 = vmatpush2.bf16.msra.mxu0 0
        %706 = vmatprep.subr.bf16.mxu0 0
        %707 = vmatpush2.bf16.msra.mxu0 0
        %708 = vmatprep.subr.bf16.mxu0 0
        %709 = vmatpush2.bf16.msra.mxu0 0
        %710 = vmatprep.mubr.bf16.mxu0 0
        %711 = vmatmul.mubr.bf16.gmra.mxu0 %v672
        %v712 = vpop.f32.mrf.mxu0
        %v713 = vadd.f32 0.0, %v712
        %v714 = vpop.f32.mrf.mxu0
        %v715 = vpop.f32.mrf.mxu0
        %v716 = vpop.f32.mrf.mxu0
        %717 = vdwg.mxu0
        %718 = vst.msk [vmem:[%s554] sm:$0xff] %vm594, %v713
        %s719 = sand.u32 %s268, 1
        %s720 = scalar_lea.sflag [#allocation4], %s719
        %s721 = sand.u32 %s268, 1
        %s722 = smul.addr %s721, 8
        %s723 = scalar_lea.vmem [#allocation10], %s722
        %s724 = sand.u32 %s298, 1
        %s725 = scalar_lea.sflag [#allocation12], %s724
        %s726 = sand.u32 %s298, 1
        %s727 = smul.addr %s726, 8
        %s728 = scalar_lea.vmem [#allocation11], %s727
        // Predicated region
        $region65: #{_sdpa_call.1} parent=47 // pred_check
          %p729 = pneg %p278
        $region66: #{_sdpa_call.1} parent=47 // pred_check_branch
          %731 = sbr.rel (%p729) target = $region68
        $region67: #{_sdpa_call.1} parent=47 // pred_region
          %s733 = ssub.s32 128, 128
          %734 = vsyncadd %s720, %s733
          %s735 = sadd.s32 %s42, %s41
          %s736 = smul.addr %s40, 4
          %s737 = sadd.s32 %s735, %s736
          %s738 = smul.addr %s737, 128
          %s739 = scalar_lea.hbm %s7, %s738
          %s741 = sshll.u32 %s723, 4
          %s742 = int_to_ptr.vmem [resolvable:$true] %s741
          %744 = dma.vmem_to_hbm [thread:$0]  %s742, 128, %s739, %s720
        $region68: #{_sdpa_call.1} parent=47 // pred_fallthru
          _
        // Predicated region
        $region69: #{_sdpa_call.1} parent=47 // pred_check
          %p745 = pneg %p308
        $region70: #{_sdpa_call.1} parent=47 // pred_check_branch
          %747 = sbr.rel (%p745) target = $region72
        $region71: #{_sdpa_call.1} parent=47 // pred_region
          %s749 = ssub.s32 128, 128
          %750 = vsyncadd %s725, %s749
          %s751 = sadd.s32 %s42, %s41
          %s752 = smul.addr %s40, 4
          %s753 = sadd.s32 %s751, %s752
          %s754 = smul.addr %s753, 128
          %s755 = scalar_lea.hbm %s8, %s754
          %s757 = sshll.u32 %s728, 4
          %s758 = int_to_ptr.vmem [resolvable:$true] %s757
          %760 = dma.vmem_to_hbm [thread:$0]  %s758, 128, %s755, %s725
        $region72: #{_sdpa_call.1} parent=47 // pred_fallthru
          _
      $region48: #{_sdpa_call.1} parent=5 // pred_fallthru
        _
      %p761 = scmp.le.s32.totalorder 2, %s30
      // Predicated region
      $region73: #{_sdpa_call.1} parent=5 // pred_check
        %p762 = pneg %p761
      $region74: #{_sdpa_call.1} parent=5 // pred_check_branch
        %764 = sbr.rel (%p762) target = $region76
      $region75: #{_sdpa_call.1} parent=5 // pred_region
        %s765 = ssub.s32 %s30, 2
        // Predicated region
        $region77: #{_sdpa_call.1} parent=75 // pred_check
          %p766 = pneg %p284
        $region78: #{_sdpa_call.1} parent=75 // pred_check_branch
          %768 = sbr.rel (%p766) target = $region80
        $region79: #{_sdpa_call.1} parent=75 // pred_region
          %s769 = sand.u32 %s269, 1
          %s770 = scalar_lea.sflag [#allocation4], %s769
          %s771 = sand.u32 %s269, 1
          %s772 = smul.addr %s771, 8
          %s773 = scalar_lea.vmem [#allocation10], %s772
          %774 = dma.done %s770, 128
        $region80: #{_sdpa_call.1} parent=75 // pred_fallthru
          _
        // Predicated region
        $region81: #{_sdpa_call.1} parent=75 // pred_check
          %p775 = pneg %p314
        $region82: #{_sdpa_call.1} parent=75 // pred_check_branch
          %777 = sbr.rel (%p775) target = $region84
        $region83: #{_sdpa_call.1} parent=75 // pred_region
          %s778 = sand.u32 %s299, 1
          %s779 = scalar_lea.sflag [#allocation12], %s778
          %s780 = sand.u32 %s299, 1
          %s781 = smul.addr %s780, 8
          %s782 = scalar_lea.vmem [#allocation11], %s781
          %783 = dma.done %s779, 128
        $region84: #{_sdpa_call.1} parent=75 // pred_fallthru
          _
      $region76: #{_sdpa_call.1} parent=5 // pred_fallthru
        _
    $region6: #{_sdpa_call.1} parent=1 // loop_footer
      %s34 = sadd.s32 1, %s30
    $region7: #{_sdpa_call.1} parent=1 // loop_footer_branch
      %29 = sbr.rel target = $region3
    $region8: #{_sdpa_call.1} parent=1 // loop_exit
      _
    %784 = vsyncpa [#allocation3], 1
    %s785 = scalar_lea.sflag [#allocation3], 1
    %786 = vsyncpa %s785, 1
    %787 = vsyncpa [#allocation6], 1
    %s788 = scalar_lea.sflag [#allocation6], 1
    %789 = vsyncpa %s788, 1
    %790 = vsyncpa [#allocation9], 1
    %s791 = scalar_lea.sflag [#allocation9], 1
    %792 = vsyncpa %s791, 1
    %793 = vsyncpa [#allocation4], 1
    %s794 = scalar_lea.sflag [#allocation4], 1
    %795 = vsyncpa %s794, 1
    %796 = vsyncpa [#allocation12], 1
    %s797 = scalar_lea.sflag [#allocation12], 1
    %798 = vsyncpa %s797, 1

</llo_original>
